<compile_context>
chip_gen: v7x
topology: tpu7x:2x2x1
jax: 0.10.0
libtpu: 0.0.40
codegen_flags: <defaults>
</compile_context>

<pallas_src>
import math

import jax
import jax.numpy as jnp
from jax.experimental import pallas as pl
from jax.experimental.pallas import tpu as pltpu


# MONAI DiceLoss defaults
_SMOOTH_NR = 1e-5
_SMOOTH_DR = 1e-5


def get_current_consistency_weight(epoch, consistency=0.1, rampup=40.0):
    # TODO(synk): the real schedule lives outside the module (mean-teacher
    # sigmoid ramp-up); this is a deterministic placeholder with the usual form.
    t = min(max(float(epoch) / rampup, 0.0), 1.0)
    return consistency * math.exp(-5.0 * (1.0 - t) ** 2)


def _row_dice(pred_rows, targ_rows):
    """Per-row (1 - dice); rows = (batch, channel) pairs, cols = flattened HW."""
    inter = jnp.sum(pred_rows * targ_rows, axis=-1, keepdims=True)
    s_p = jnp.sum(pred_rows, axis=-1, keepdims=True)
    s_t = jnp.sum(targ_rows, axis=-1, keepdims=True)
    return 1.0 - (2.0 * inter + _SMOOTH_NR) / (s_t + s_p + _SMOOTH_DR)


def pdc_loss_kernel(w_ref, fp_ref, tg_ref, prop_ref, eg_ref, te_ref, out_ref):
    # ---- main dice (include_background=False already applied by the wrapper) --
    dice_rows = _row_dice(fp_ref[...], tg_ref[...])          # (B*(C-1), 1)
    dice_loss = jnp.mean(dice_rows, keepdims=True)           # (1, 1)

    # ---- consistency dice: mid slice vs 0.5*(prev + next), per (list, batch) --
    prop = prop_ref[...]                                     # (3, L*B, HW), one load
    false_gt = 0.5 * prop[0] + 0.5 * prop[2]
    consis_rows = _row_dice(prop[1], false_gt)               # (L*B, 1)
    consis_loss = jnp.mean(consis_rows, keepdims=True)       # (1, 1)

    # ---- edge BCE (mean), logs clamped at -100 like torch.binary_cross_entropy
    p = eg_ref[...]
    t = te_ref[...]
    log_p = jnp.maximum(jnp.log(p), -100.0)                  # EUP
    log_1mp = jnp.maximum(jnp.log(1.0 - p), -100.0)
    edge_loss = jnp.mean(-(t * log_p + (1.0 - t) * log_1mp), keepdims=True)

    consis_w = w_ref[0]                                      # SMEM scalars
    edge_w = w_ref[1]
    out_ref[...] = dice_loss + consis_w * consis_loss + edge_w * edge_loss


def pdc_loss(pred, target, epoch, *, edge_weight=1.0):
    # TODO(synk): args.edge_weight is external config; exposed as a kwarg here.
    final_pred, slice_prop, edge = pred
    target_seg, target_edge = target[0], target[-1]

    B, C, H, W = final_pred.shape
    HW = H * W
    L = len(slice_prop)

    # MONAI include_background=False: drop channel 0 of pred & target (C > 1).
    fp = final_pred[:, 1:].reshape(B * (C - 1), HW).astype(jnp.float32)
    tg = target_seg[:, 1:].reshape(B * (C - 1), HW).astype(jnp.float32)

    # slice_prop list -> channel-major (3, L*B, HW) so the kernel only indexes
    # the leading axis (prev / mid / next slabs), lane-dense last dim.
    prop = jnp.stack(slice_prop).astype(jnp.float32)         # (L, B, 3, H, W)
    prop = jnp.transpose(prop, (2, 0, 1, 3, 4)).reshape(3, L * B, HW)

    eg = edge.reshape(-1, HW).astype(jnp.float32)            # (B, HW)
    te = target_edge.reshape(-1, HW).astype(jnp.float32)

    weights = jnp.array(
        [get_current_consistency_weight(epoch), edge_weight], dtype=jnp.float32
    )

    out = pl.pallas_call(
        pdc_loss_kernel,
        out_shape=jax.ShapeDtypeStruct((1, 1), jnp.float32),
        in_specs=[
            pl.BlockSpec(memory_space=pltpu.MemorySpace.SMEM),  # weights
            pl.BlockSpec(memory_space=pltpu.MemorySpace.VMEM),  # fp
            pl.BlockSpec(memory_space=pltpu.MemorySpace.VMEM),  # tg
            pl.BlockSpec(memory_space=pltpu.MemorySpace.VMEM),  # prop
            pl.BlockSpec(memory_space=pltpu.MemorySpace.VMEM),  # edge
            pl.BlockSpec(memory_space=pltpu.MemorySpace.VMEM),  # target edge
        ],
        out_specs=pl.BlockSpec(memory_space=pltpu.MemorySpace.VMEM),
    )(weights, fp, tg, prop, eg, te)
    return out[0, 0]


# ----------------------------- pure-JAX reference -----------------------------
def _monai_dice_ref(inp, tgt):
    if inp.shape[1] > 1:  # include_background=False (MONAI keeps single channel)
        inp, tgt = inp[:, 1:], tgt[:, 1:]
    inter = jnp.sum(inp * tgt, axis=(2, 3))
    s_p = jnp.sum(inp, axis=(2, 3))
    s_t = jnp.sum(tgt, axis=(2, 3))
    return jnp.mean(1.0 - (2.0 * inter + _SMOOTH_NR) / (s_t + s_p + _SMOOTH_DR))


def pdc_loss_ref(pred, target, epoch, *, edge_weight=1.0):
    final_pred, slice_prop, edge = pred
    target_seg, target_edge = target[0], target[-1]
    final_pred = final_pred.astype(jnp.float32)
    target_seg = target_seg.astype(jnp.float32)

    dice_loss = _monai_dice_ref(final_pred, target_seg)

    L = len(slice_prop)
    aux = 0.0
    for prop in slice_prop:
        prop = prop.astype(jnp.float32)
        fg = (0.5 * prop[:, 0] + 0.5 * prop[:, 2])[:, None]
        mid = prop[:, 1][:, None]
        aux = aux + _monai_dice_ref(mid, fg)
    consis_loss = get_current_consistency_weight(epoch) * (aux / L)

    p = edge.astype(jnp.float32)
    t = target_edge.astype(jnp.float32)
    log_p = jnp.maximum(jnp.log(p), -100.0)
    log_1mp = jnp.maximum(jnp.log(1.0 - p), -100.0)
    edge_loss = jnp.mean(-(t * log_p + (1.0 - t) * log_1mp))

    return dice_loss + consis_loss + edge_weight * edge_loss


if __name__ == "__main__":
    key = jax.random.PRNGKey(0)
    k1, k2, k3, k4, k5, k6 = jax.random.split(key, 6)

    B, C, H, W, L = 2, 4, 16, 16, 2
    epoch = 10
    edge_weight = 1.0

    # final prediction: per-pixel class probabilities; target: one-hot labels
    final_pred = jax.nn.softmax(jax.random.normal(k1, (B, C, H, W), jnp.float32), axis=1)
    labels = jax.random.randint(k2, (B, H, W), 0, C)
    target_seg = jnp.transpose(jax.nn.one_hot(labels, C, dtype=jnp.float32), (0, 3, 1, 2))

    # per-scale slice propagation maps (prev / mid / next slice probabilities)
    slice_prop = [
        jax.nn.sigmoid(jax.random.normal(k3, (B, 3, H, W), jnp.float32)),
        jax.nn.sigmoid(jax.random.normal(k4, (B, 3, H, W), jnp.float32)),
    ]

    # edge prediction + binary edge target
    edge = jax.nn.sigmoid(jax.random.normal(k5, (B, 1, H, W), jnp.float32))
    target_edge = (jax.random.uniform(k6, (B, 1, H, W)) > 0.5).astype(jnp.float32)

    pred = (final_pred, slice_prop, edge)
    target = (target_seg, target_edge)

    out = pdc_loss(pred, target, epoch, edge_weight=edge_weight)
    out = jax.block_until_ready(out)

    ref = pdc_loss_ref(pred, target, epoch, edge_weight=edge_weight)
    assert jnp.allclose(out, ref, atol=1e-5, rtol=1e-5), (out, ref)
    print("KERNEL_OK")
</pallas_src>

<mosaic_0001>
module attributes {stable_mosaic.version = 11 : i64} {
  func.func @pdc_loss_kernel(%arg0: memref<2xf32, #tpu.memory_space<smem>>, %arg1: memref<6x256xf32, #tpu.memory_space<vmem>>, %arg2: memref<6x256xf32, #tpu.memory_space<vmem>>, %arg3: memref<3x4x256xf32, #tpu.memory_space<vmem>>, %arg4: memref<2x256xf32, #tpu.memory_space<vmem>>, %arg5: memref<2x256xf32, #tpu.memory_space<vmem>>, %arg6: memref<1x1xf32, #tpu.memory_space<vmem>>) attributes {dimension_semantics = [], scalar_prefetch = 0 : i64, scratch_operands = 0 : i64, tpu.core_type = #tpu.core_type<tc>} {
    %c0 = arith.constant 0 : index
    %c0_0 = arith.constant 0 : index
    %0 = vector.load %arg1[%c0, %c0_0] : memref<6x256xf32, #tpu.memory_space<vmem>>, vector<6x256xf32>
    %c0_1 = arith.constant 0 : index
    %c0_2 = arith.constant 0 : index
    %1 = vector.load %arg2[%c0_1, %c0_2] : memref<6x256xf32, #tpu.memory_space<vmem>>, vector<6x256xf32>
    %2 = arith.mulf %0, %1 : vector<6x256xf32>
    %cst = arith.constant dense<0.000000e+00> : vector<6xf32>
    %3 = vector.multi_reduction <add>, %2, %cst [1] : vector<6x256xf32> to vector<6xf32>
    %4 = vector.shape_cast %3 : vector<6xf32> to vector<6x1xf32>
    %cst_3 = arith.constant dense<0.000000e+00> : vector<6xf32>
    %5 = vector.multi_reduction <add>, %0, %cst_3 [1] : vector<6x256xf32> to vector<6xf32>
    %6 = vector.shape_cast %5 : vector<6xf32> to vector<6x1xf32>
    %cst_4 = arith.constant dense<0.000000e+00> : vector<6xf32>
    %7 = vector.multi_reduction <add>, %1, %cst_4 [1] : vector<6x256xf32> to vector<6xf32>
    %8 = vector.shape_cast %7 : vector<6xf32> to vector<6x1xf32>
    %cst_5 = arith.constant 2.000000e+00 : f32
    %9 = vector.broadcast %cst_5 : f32 to vector<6x1xf32>
    %10 = arith.mulf %9, %4 : vector<6x1xf32>
    %cst_6 = arith.constant 9.99999974E-6 : f32
    %11 = vector.broadcast %cst_6 : f32 to vector<6x1xf32>
    %12 = arith.addf %10, %11 : vector<6x1xf32>
    %13 = arith.addf %8, %6 : vector<6x1xf32>
    %cst_7 = arith.constant 9.99999974E-6 : f32
    %14 = vector.broadcast %cst_7 : f32 to vector<6x1xf32>
    %15 = arith.addf %13, %14 : vector<6x1xf32>
    %16 = arith.divf %12, %15 : vector<6x1xf32>
    %cst_8 = arith.constant 1.000000e+00 : f32
    %17 = vector.broadcast %cst_8 : f32 to vector<6x1xf32>
    %18 = arith.subf %17, %16 : vector<6x1xf32>
    %19 = vector.shape_cast %18 : vector<6x1xf32> to vector<1x6x1xf32>
    %cst_9 = arith.constant dense<0.000000e+00> : vector<1xf32>
    %20 = vector.multi_reduction <add>, %19, %cst_9 [1, 2] : vector<1x6x1xf32> to vector<1xf32>
    %21 = vector.shape_cast %20 : vector<1xf32> to vector<1x1x1xf32>
    %22 = vector.extract %21[0, 0, 0] : f32 from vector<1x1x1xf32>
    %23 = vector.broadcast %22 : f32 to vector<1x1xf32>
    %cst_10 = arith.constant 6.000000e+00 : f32
    %24 = vector.broadcast %cst_10 : f32 to vector<1x1xf32>
    %25 = arith.divf %23, %24 : vector<1x1xf32>
    %c0_11 = arith.constant 0 : index
    %c0_12 = arith.constant 0 : index
    %c0_13 = arith.constant 0 : index
    %26 = vector.load %arg3[%c0_11, %c0_12, %c0_13] : memref<3x4x256xf32, #tpu.memory_space<vmem>>, vector<3x4x256xf32>
    %27 = vector.extract_strided_slice %26 {offsets = [0, 0, 0], sizes = [1, 4, 256], strides = [1, 1, 1]} : vector<3x4x256xf32> to vector<1x4x256xf32>
    %28 = vector.shape_cast %27 : vector<1x4x256xf32> to vector<4x256xf32>
    %cst_14 = arith.constant 5.000000e-01 : f32
    %29 = vector.broadcast %cst_14 : f32 to vector<4x256xf32>
    %30 = arith.mulf %29, %28 : vector<4x256xf32>
    %31 = vector.extract_strided_slice %26 {offsets = [2, 0, 0], sizes = [1, 4, 256], strides = [1, 1, 1]} : vector<3x4x256xf32> to vector<1x4x256xf32>
    %32 = vector.shape_cast %31 : vector<1x4x256xf32> to vector<4x256xf32>
    %cst_15 = arith.constant 5.000000e-01 : f32
    %33 = vector.broadcast %cst_15 : f32 to vector<4x256xf32>
    %34 = arith.mulf %33, %32 : vector<4x256xf32>
    %35 = arith.addf %30, %34 : vector<4x256xf32>
    %36 = vector.extract_strided_slice %26 {offsets = [1, 0, 0], sizes = [1, 4, 256], strides = [1, 1, 1]} : vector<3x4x256xf32> to vector<1x4x256xf32>
    %37 = vector.shape_cast %36 : vector<1x4x256xf32> to vector<4x256xf32>
    %38 = arith.mulf %37, %35 : vector<4x256xf32>
    %cst_16 = arith.constant dense<0.000000e+00> : vector<4xf32>
    %39 = vector.multi_reduction <add>, %38, %cst_16 [1] : vector<4x256xf32> to vector<4xf32>
    %40 = vector.shape_cast %39 : vector<4xf32> to vector<4x1xf32>
    %cst_17 = arith.constant dense<0.000000e+00> : vector<4xf32>
    %41 = vector.multi_reduction <add>, %37, %cst_17 [1] : vector<4x256xf32> to vector<4xf32>
    %42 = vector.shape_cast %41 : vector<4xf32> to vector<4x1xf32>
    %cst_18 = arith.constant dense<0.000000e+00> : vector<4xf32>
    %43 = vector.multi_reduction <add>, %35, %cst_18 [1] : vector<4x256xf32> to vector<4xf32>
    %44 = vector.shape_cast %43 : vector<4xf32> to vector<4x1xf32>
    %cst_19 = arith.constant 2.000000e+00 : f32
    %45 = vector.broadcast %cst_19 : f32 to vector<4x1xf32>
    %46 = arith.mulf %45, %40 : vector<4x1xf32>
    %cst_20 = arith.constant 9.99999974E-6 : f32
    %47 = vector.broadcast %cst_20 : f32 to vector<4x1xf32>
    %48 = arith.addf %46, %47 : vector<4x1xf32>
    %49 = arith.addf %44, %42 : vector<4x1xf32>
    %cst_21 = arith.constant 9.99999974E-6 : f32
    %50 = vector.broadcast %cst_21 : f32 to vector<4x1xf32>
    %51 = arith.addf %49, %50 : vector<4x1xf32>
    %52 = arith.divf %48, %51 : vector<4x1xf32>
    %cst_22 = arith.constant 1.000000e+00 : f32
    %53 = vector.broadcast %cst_22 : f32 to vector<4x1xf32>
    %54 = arith.subf %53, %52 : vector<4x1xf32>
    %55 = vector.shape_cast %54 : vector<4x1xf32> to vector<1x4x1xf32>
    %cst_23 = arith.constant dense<0.000000e+00> : vector<1xf32>
    %56 = vector.multi_reduction <add>, %55, %cst_23 [1, 2] : vector<1x4x1xf32> to vector<1xf32>
    %57 = vector.shape_cast %56 : vector<1xf32> to vector<1x1x1xf32>
    %58 = vector.extract %57[0, 0, 0] : f32 from vector<1x1x1xf32>
    %59 = vector.broadcast %58 : f32 to vector<1x1xf32>
    %cst_24 = arith.constant 4.000000e+00 : f32
    %60 = vector.broadcast %cst_24 : f32 to vector<1x1xf32>
    %61 = arith.divf %59, %60 : vector<1x1xf32>
    %c0_25 = arith.constant 0 : index
    %c0_26 = arith.constant 0 : index
    %62 = vector.load %arg4[%c0_25, %c0_26] : memref<2x256xf32, #tpu.memory_space<vmem>>, vector<2x256xf32>
    %c0_27 = arith.constant 0 : index
    %c0_28 = arith.constant 0 : index
    %63 = vector.load %arg5[%c0_27, %c0_28] : memref<2x256xf32, #tpu.memory_space<vmem>>, vector<2x256xf32>
    %64 = math.log %62 : vector<2x256xf32>
    %cst_29 = arith.constant -1.000000e+02 : f32
    %65 = vector.broadcast %cst_29 : f32 to vector<2x256xf32>
    %66 = arith.maximumf %64, %65 : vector<2x256xf32>
    %cst_30 = arith.constant 1.000000e+00 : f32
    %67 = vector.broadcast %cst_30 : f32 to vector<2x256xf32>
    %68 = arith.subf %67, %62 : vector<2x256xf32>
    %69 = math.log %68 : vector<2x256xf32>
    %cst_31 = arith.constant -1.000000e+02 : f32
    %70 = vector.broadcast %cst_31 : f32 to vector<2x256xf32>
    %71 = arith.maximumf %69, %70 : vector<2x256xf32>
    %72 = arith.mulf %63, %66 : vector<2x256xf32>
    %cst_32 = arith.constant 1.000000e+00 : f32
    %73 = vector.broadcast %cst_32 : f32 to vector<2x256xf32>
    %74 = arith.subf %73, %63 : vector<2x256xf32>
    %75 = arith.mulf %74, %71 : vector<2x256xf32>
    %76 = arith.addf %72, %75 : vector<2x256xf32>
    %cst_33 = arith.constant 0.000000e+00 : f32
    %77 = vector.broadcast %cst_33 : f32 to vector<2x256xf32>
    %78 = arith.subf %77, %76 : vector<2x256xf32>
    %79 = vector.shape_cast %78 : vector<2x256xf32> to vector<1x2x256xf32>
    %cst_34 = arith.constant dense<0.000000e+00> : vector<1xf32>
    %80 = vector.multi_reduction <add>, %79, %cst_34 [1, 2] : vector<1x2x256xf32> to vector<1xf32>
    %81 = vector.shape_cast %80 : vector<1xf32> to vector<1x1x1xf32>
    %82 = vector.extract %81[0, 0, 0] : f32 from vector<1x1x1xf32>
    %83 = vector.broadcast %82 : f32 to vector<1x1xf32>
    %cst_35 = arith.constant 5.120000e+02 : f32
    %84 = vector.broadcast %cst_35 : f32 to vector<1x1xf32>
    %85 = arith.divf %83, %84 : vector<1x1xf32>
    %c0_36 = arith.constant 0 : index
    %86 = memref.load %arg0[%c0_36] : memref<2xf32, #tpu.memory_space<smem>>
    %c1 = arith.constant 1 : index
    %87 = memref.load %arg0[%c1] : memref<2xf32, #tpu.memory_space<smem>>
    %88 = vector.broadcast %86 : f32 to vector<1x1xf32>
    %89 = arith.mulf %88, %61 : vector<1x1xf32>
    %90 = arith.addf %25, %89 : vector<1x1xf32>
    %91 = vector.broadcast %87 : f32 to vector<1x1xf32>
    %92 = arith.mulf %91, %85 : vector<1x1xf32>
    %93 = arith.addf %90, %92 : vector<1x1xf32>
    %c0_37 = arith.constant 0 : index
    %c0_38 = arith.constant 0 : index
    %94 = vector.load %arg6[%c0_37, %c0_38] : memref<1x1xf32, #tpu.memory_space<vmem>>, vector<1x1xf32>
    tpu.vector_store %arg6[%c0_37, %c0_38], %93 {strides = array<i32>} : memref<1x1xf32, #tpu.memory_space<vmem>>, vector<1x1xf32>,
    return
  }
}

</mosaic_0001>

<llo_original>
// kernel: tpu_custom_call.1
$region0: #{tpu_custom_call.1}
  #allocation0 [shape = 'u32[]', space=smem, size = 0x4, offset = 0x4, fixed_abs, tag = 'smem constant byte address 0x4 - core index']
  #allocation1 [shape = 'u32[144,128]{1,0:T(1,128)}', space=vmem, size = 0x12000, scoped, tag = 'internal scratch']
  %s0 = inlined_call_operand.hbm [shape: f32[2], index: 0, kind: input, shape index: {}]
  %s1 = inlined_call_operand.hbm [shape: f32[6,256], index: 1, kind: input, shape index: {}]
  %s2 = inlined_call_operand.hbm [shape: f32[6,256], index: 2, kind: input, shape index: {}]
  %s3 = inlined_call_operand.hbm [shape: f32[3,4,256], index: 3, kind: input, shape index: {}]
  %s4 = inlined_call_operand.vmem [shape: f32[2,256], index: 4, kind: input, shape index: {}]
  %s5 = inlined_call_operand.vmem [shape: f32[2,256], index: 5, kind: input, shape index: {}]
  %s6 = inlined_call_operand.hbm [shape: f32[1,1], index: 6, kind: output, shape index: {}]
  %s7 = sld [smem:[#allocation0]]
  $region50: #{tpu_custom_call.1} parent=0
    _
  %s9 = ssub.s32 1, %s7
  %s10 = scalar_select 0, %s9, %s7
  $region1: #{tpu_custom_call.1} parent=0
    #allocation2 [shape = 'u8[512]{0}', space=smem, size = 0x200, scoped, tag = 'input window, operand 0, single buffered']
    #allocation3 [shape = 's32[1]{0}', space=sflag, size = 0x4, scoped, tag = 'scoped memory for tpu_custom_call.1']
    #allocation4 [shape = 's32[1]{0}', space=sflag, size = 0x4, scoped, tag = 'scoped memory for tpu_custom_call.1']
    #allocation5 [shape = 's32[1]{0}', space=sflag, size = 0x4, scoped, tag = 'scoped memory for tpu_custom_call.1']
    #allocation6 [shape = 'u8[8192]{0}', space=vmem, size = 0x2000, scoped, tag = 'input window, operand 1, single buffered']
    #allocation7 [shape = 'u8[8192]{0}', space=vmem, size = 0x2000, scoped, tag = 'input window, operand 2, single buffered']
    #allocation8 [shape = 's32[1]{0}', space=sflag, size = 0x4, scoped, tag = 'scoped memory for tpu_custom_call.1']
    #allocation9 [shape = 'u8[12288]{0}', space=vmem, size = 0x3000, scoped, tag = 'input window, operand 3, single buffered']
    #allocation10 [shape = 'u8[512]{0}', space=vmem, size = 0x400, scoped, tag = 'output window, operand 0, single buffered']
    %11 = vsyncpa [#allocation5], 0
    %12 = vsyncpa [#allocation3], 0
    %13 = vsyncpa [#allocation8], 0
    %14 = vsyncpa [#allocation4], 0
    // Predicated region
    $region2: #{tpu_custom_call.1} parent=1 // pred_check
      _
    $region3: #{tpu_custom_call.1} parent=1 // pred_check_branch
      %16 = sbr.rel (0) target = $region5
    $region4: #{tpu_custom_call.1} parent=1 // pred_region
      %s18 = ssub.s32 16, 16
      %19 = vsyncadd [#allocation5], %s18
      %22 = dma.hbm_to_smem %s0, 16, [#allocation2], [#allocation5]
    $region5: #{tpu_custom_call.1} parent=1 // pred_fallthru
      _
    // Predicated region
    $region6: #{tpu_custom_call.1} parent=1 // pred_check
      _
    $region7: #{tpu_custom_call.1} parent=1 // pred_check_branch
      %24 = sbr.rel (0) target = $region9
    $region8: #{tpu_custom_call.1} parent=1 // pred_region
      %s26 = ssub.s32 256, 256
      %27 = vsyncadd [#allocation3], %s26
      %s29 = sshll.u32 [#allocation6], 4
      %s30 = int_to_ptr.vmem [resolvable:$true] %s29
      %32 = dma.hbm_to_vmem [thread:$0]  %s1, 256, %s30, [#allocation3]
    $region9: #{tpu_custom_call.1} parent=1 // pred_fallthru
      _
    // Predicated region
    $region10: #{tpu_custom_call.1} parent=1 // pred_check
      _
    $region11: #{tpu_custom_call.1} parent=1 // pred_check_branch
      %34 = sbr.rel (0) target = $region13
    $region12: #{tpu_custom_call.1} parent=1 // pred_region
      %s36 = ssub.s32 256, 256
      %37 = vsyncadd [#allocation8], %s36
      %s39 = sshll.u32 [#allocation7], 4
      %s40 = int_to_ptr.vmem [resolvable:$true] %s39
      %42 = dma.hbm_to_vmem [thread:$0]  %s2, 256, %s40, [#allocation8]
    $region13: #{tpu_custom_call.1} parent=1 // pred_fallthru
      _
    // Predicated region
    $region14: #{tpu_custom_call.1} parent=1 // pred_check
      _
    $region15: #{tpu_custom_call.1} parent=1 // pred_check_branch
      %44 = sbr.rel (0) target = $region17
    $region16: #{tpu_custom_call.1} parent=1 // pred_region
      %s46 = ssub.s32 384, 384
      %47 = vsyncadd [#allocation8], %s46
      %s48 = sshll.u32 [#allocation9], 4
      %s49 = int_to_ptr.vmem [resolvable:$true] %s48
      %54 = dma.hbm_to_vmem [thread:$0]  %s3, 384, %s49, [#allocation8], 128, 128, 8
    $region17: #{tpu_custom_call.1} parent=1 // pred_fallthru
      _
    // Predicated region
    $region18: #{tpu_custom_call.1} parent=1 // pred_check
      _
    $region19: #{tpu_custom_call.1} parent=1 // pred_check_branch
      %56 = sbr.rel (0) target = $region21
    $region20: #{tpu_custom_call.1} parent=1 // pred_region
      _
    $region21: #{tpu_custom_call.1} parent=1 // pred_fallthru
      _
    // Predicated region
    $region22: #{tpu_custom_call.1} parent=1 // pred_check
      _
    $region23: #{tpu_custom_call.1} parent=1 // pred_check_branch
      %58 = sbr.rel (0) target = $region25
    $region24: #{tpu_custom_call.1} parent=1 // pred_region
      _
    $region25: #{tpu_custom_call.1} parent=1 // pred_fallthru
      _
    // Predicated region
    $region26: #{tpu_custom_call.1} parent=1 // pred_check
      _
    $region27: #{tpu_custom_call.1} parent=1 // pred_check_branch
      %60 = sbr.rel (0) target = $region29
    $region28: #{tpu_custom_call.1} parent=1 // pred_region
      %61 = dma.done [#allocation5], 16
    $region29: #{tpu_custom_call.1} parent=1 // pred_fallthru
      _
    // Predicated region
    $region30: #{tpu_custom_call.1} parent=1 // pred_check
      _
    $region31: #{tpu_custom_call.1} parent=1 // pred_check_branch
      %63 = sbr.rel (0) target = $region33
    $region32: #{tpu_custom_call.1} parent=1 // pred_region
      %64 = dma.done [#allocation3], 256
    $region33: #{tpu_custom_call.1} parent=1 // pred_fallthru
      _
    // Predicated region
    $region34: #{tpu_custom_call.1} parent=1 // pred_check
      _
    $region35: #{tpu_custom_call.1} parent=1 // pred_check_branch
      %66 = sbr.rel (0) target = $region37
    $region36: #{tpu_custom_call.1} parent=1 // pred_region
      %67 = dma.done [#allocation8], 256
    $region37: #{tpu_custom_call.1} parent=1 // pred_fallthru
      _
    // Predicated region
    $region38: #{tpu_custom_call.1} parent=1 // pred_check
      _
    $region39: #{tpu_custom_call.1} parent=1 // pred_check_branch
      %69 = sbr.rel (0) target = $region41
    $region40: #{tpu_custom_call.1} parent=1 // pred_region
      %70 = dma.done [#allocation8], 384
    $region41: #{tpu_custom_call.1} parent=1 // pred_fallthru
      _
    %71 = sfence
    %v72 = vld [vmem:[#allocation6] sm:$0x3f]
    %v73 = vld [vmem:[#allocation6 + $0x8] sm:$0x3f]
    %v74 = vld [vmem:[#allocation7] sm:$0x3f]
    %v75 = vld [vmem:[#allocation7 + $0x8] sm:$0x3f]
    %v76 = vmul.f32 %v72, %v74
    %v77 = vmul.f32 %v73, %v75
    %vm78 = vcmask 1045504
    %v79 = vsel %vm78, %v76, 0.0
    %v80 = vsel %vm78, %v77, 0.0
    %v81 = vadd.f32 %v79, %v80
    %82 = vadd.xlane.f32.xlu0 %v81
    %v83 = vpop.xlane.xlu0 %82
    %v84 = vsel %vm78, %v72, 0.0
    %v85 = vsel %vm78, %v73, 0.0
    %v86 = vadd.f32 %v84, %v85
    %87 = vadd.xlane.f32.xlu0 %v86
    %v88 = vpop.xlane.xlu0 %87
    %v89 = vsel %vm78, %v74, 0.0
    %v90 = vsel %vm78, %v75, 0.0
    %v91 = vadd.f32 %v89, %v90
    %92 = vadd.xlane.f32.xlu0 %v91
    %v93 = vpop.xlane.xlu0 %92
    %v94 = vmul.f32 %v83, 2.0
    %v95 = vadd.f32 %v94, 1e-05
    %v96 = vadd.f32 %v93, %v88
    %v97 = vadd.f32 %v96, 1e-05
    %v98 = vrcp.pop %v97
    %v99 = vmul.f32 %v95, %v98
    %v100 = vsub.f32 1.0, %v99
    %vm101 = vcmask 5120
    %v102 = vsel %vm101, %v100, 0.0
    %103 = vadd.xlane.f32.xlu0 %v102
    %v104 = vpop.xlane.xlu0 %103
    %v105 = vrot.slane %v104, 4
    %v106 = vadd.f32 %v104, %v105
    %v107 = vrot.slane %v106, 2
    %v108 = vadd.f32 %v106, %v107
    %v109 = vrot.slane %v108, 1
    %v110 = vadd.f32 %v108, %v109
    %s111 = vtos %v110
    %v112 = vstv %s111
    %v113 = vrcp.pop 6.0
    %v114 = vmul.f32 %v112, %v113
    %v115 = vld [vmem:[#allocation9] sm:$0xff]
    %v116 = vld [vmem:[#allocation9 + $0x8] sm:$0xff]
    %v117 = vld [vmem:[#allocation9 + $0x10] sm:$0xff]
    %v118 = vmul.f32 %v115, 0.5
    %v119 = vmul.f32 %v117, 0.5
    %v120 = vadd.f32 %v118, %v119
    %v121 = vmul.f32 %v116, %v120
    %v123 = vcombine.high %v121, %v121
    %vm125 = vcmask 1043456
    %v126 = vsel %vm125, %v121, 0.0
    %v127 = vsel %vm125, %v123, 0.0
    %v128 = vadd.f32 %v126, %v127
    %129 = vadd.xlane.f32.xlu0 %v128
    %v130 = vpop.xlane.xlu0 %129
    %v132 = vcombine.high %v116, %v116
    %v134 = vsel %vm125, %v116, 0.0
    %v135 = vsel %vm125, %v132, 0.0
    %v136 = vadd.f32 %v134, %v135
    %137 = vadd.xlane.f32.xlu0 %v136
    %v138 = vpop.xlane.xlu0 %137
    %v140 = vcombine.high %v120, %v120
    %v142 = vsel %vm125, %v120, 0.0
    %v143 = vsel %vm125, %v140, 0.0
    %v144 = vadd.f32 %v142, %v143
    %145 = vadd.xlane.f32.xlu0 %v144
    %v146 = vpop.xlane.xlu0 %145
    %v147 = vmul.f32 %v130, 2.0
    %v148 = vadd.f32 %v147, 1e-05
    %v149 = vadd.f32 %v146, %v138
    %v150 = vadd.f32 %v149, 1e-05
    %v151 = vrcp.pop %v150
    %v152 = vmul.f32 %v148, %v151
    %v153 = vsub.f32 1.0, %v152
    %vm154 = vcmask 3072
    %v155 = vsel %vm154, %v153, 0.0
    %156 = vadd.xlane.f32.xlu0 %v155
    %v157 = vpop.xlane.xlu0 %156
    %v158 = vrot.slane %v157, 4
    %v159 = vadd.f32 %v157, %v158
    %v160 = vrot.slane %v159, 2
    %v161 = vadd.f32 %v159, %v160
    %v162 = vrot.slane %v161, 1
    %v163 = vadd.f32 %v161, %v162
    %s164 = vtos %v163
    %v165 = vstv %s164
    %v166 = vrcp.pop 4.0
    %v167 = vmul.f32 %v165, %v166
    %v168 = vld [vmem:[%s4] sm:$0xf]
    %v169 = vld [vmem:[%s5] sm:$0xf]
    %v170 = vlog2.pop %v168
    %v171 = vmul.f32 %v170, 0.6931472
    %v172 = vmax.f32 %v171, -100.0
    %v173 = vsub.f32 1.0, %v168
    %v174 = vlog2.pop %v173
    %v175 = vmul.f32 %v174, 0.6931472
    %v176 = vmax.f32 %v175, -100.0
    %v177 = vmul.f32 %v169, %v172
    %v178 = vsub.f32 1.0, %v169
    %v179 = vmul.f32 %v178, %v176
    %v180 = vadd.f32 %v177, %v179
    %v181 = vsub.f32 0.0, %v180
    %v184 = vunpack.c.l.s4 1983009808
    %v185 = vunpack.c.0.s8 %v184
    %v186 = vlaneseq
    %v187 = vshrl.u32 %v186, 7
    %v188 = vsub.s32 %v185, %v187
    %v189 = vrot.slane %v181, %v188
    %v190 = vcombine.high %v189, %v189
    %vm193 = vcmask 1041408
    %v194 = vsel %vm193, %v189, 0.0
    %v195 = vsel %vm193, %v190, 0.0
    %v196 = vadd.f32 %v194, %v195
    %197 = vadd.xlane.f32.xlu0 %v196
    %v198 = vpop.xlane.xlu0 %197
    %v199 = vrot.slane %v198, 4
    %v200 = vadd.f32 %v198, %v199
    %v201 = vrot.slane %v200, 2
    %v202 = vadd.f32 %v200, %v201
    %v203 = vrot.slane %v202, 1
    %v204 = vadd.f32 %v202, %v203
    %s205 = vtos %v204
    %v206 = vstv %s205
    %v207 = vrcp.pop 512.0
    %v208 = vmul.f32 %v206, %v207
    %s209 = sld [smem:[#allocation2]]
    %s210 = sld [smem:[#allocation2 + $0x1]]
    %v211 = vstv %s209
    %v212 = vmul.f32 %v211, %v167
    %v213 = vadd.f32 %v114, %v212
    %v214 = vstv %s210
    %v215 = vmul.f32 %v214, %v208
    %v216 = vadd.f32 %v213, %v215
    %vm217 = vcmask 0
    %218 = vst.msk [vmem:[#allocation10] sm:$0x1] %vm217, %v216
    // Predicated region
    $region42: #{tpu_custom_call.1} parent=1 // pred_check
      _
    $region43: #{tpu_custom_call.1} parent=1 // pred_check_branch
      %220 = sbr.rel (0) target = $region45
    $region44: #{tpu_custom_call.1} parent=1 // pred_region
      %s222 = ssub.s32 16, 16
      %223 = vsyncadd [#allocation4], %s222
      %s225 = sshll.u32 [#allocation10], 4
      %s226 = int_to_ptr.vmem [resolvable:$true] %s225
      %228 = dma.vmem_to_hbm [thread:$0]  %s226, 16, %s6, [#allocation4]
    $region45: #{tpu_custom_call.1} parent=1 // pred_fallthru
      _
    // Predicated region
    $region46: #{tpu_custom_call.1} parent=1 // pred_check
      _
    $region47: #{tpu_custom_call.1} parent=1 // pred_check_branch
      %230 = sbr.rel (0) target = $region49
    $region48: #{tpu_custom_call.1} parent=1 // pred_region
      %231 = dma.done [#allocation4], 16
    $region49: #{tpu_custom_call.1} parent=1 // pred_fallthru
      _
    %232 = vsyncpa [#allocation3], 1
    %233 = vsyncpa [#allocation8], 1
    %234 = vsyncpa [#allocation4], 1
    %235 = vsyncpa [#allocation5], 1

</llo_original>
